<compile_context>
chip_gen: v7x
topology: tpu7x:2x2x1
jax: 0.10.0
libtpu: 0.0.40
codegen_flags: <defaults>
</compile_context>

<pallas_src>
import jax
import jax.numpy as jnp
from jax.experimental import pallas as pl
from jax.experimental.pallas import tpu as pltpu


_LANE = 128


def _round_up(x, m):
    return ((x + m - 1) // m) * m


def _pick_tile(dim, prefs):
    """Largest preferred tile that evenly divides `dim` (dim is always a
    multiple of 128 here, so 128 always matches)."""
    for t in prefs:
        if t <= dim and dim % t == 0:
            return t
    return dim


def _vmem_limit_bytes():
    """Generation-aware scoped-VMEM budget."""
    default = 64 * 1024 * 1024
    try:
        info = pltpu.get_tpu_info()
        cap = getattr(info, "vmem_capacity_bytes", None)
    except Exception:
        return default
    if not cap:
        return default
    if cap >= 128 * 1024 * 1024:          # v5e / v6e (128 MiB physical)
        return 64 * 1024 * 1024
    # v7x (64 MiB physical): leave double-buffer headroom.
    return min(48 * 1024 * 1024, (cap * 3) // 4)


def _make_kernel(pre_summed: bool, direct_out: bool):
    """Kernel factory.

    pre_summed: LHS already folded to S = x1 + x3 (single LHS stream).
    direct_out: output dtype is f32 -> accumulate straight into o_ref
                (its index_map ignores k, so the block is resident).
    """

    def kernel(*refs):
        if pre_summed:
            lhs_ref, rhs_ref = refs[0], refs[1]
            rest = refs[2:]
            lhs = lhs_ref[...]
        else:
            x1_ref, rhs_ref, x3_ref = refs[0], refs[1], refs[2]
            rest = refs[3:]
            lhs = x1_ref[...] + x3_ref[...]        # VPU pre-add -> one MXU pass

        if direct_out:
            (o_ref,) = rest
            acc_ref = o_ref
        else:
            o_ref, acc_ref = rest

        k = pl.program_id(2)

        @pl.when(k == 0)
        def _init():
            acc_ref[...] = jnp.zeros_like(acc_ref)

        acc_ref[...] += jnp.dot(lhs, rhs_ref[...],
                                preferred_element_type=jnp.float32)

        if not direct_out:
            @pl.when(k == pl.num_programs(2) - 1)
            def _fin():
                o_ref[...] = acc_ref[...].astype(o_ref.dtype)

    return kernel


def model_forward(x1, x2, x3, inp=None, *, use_bf16=False):
    """Pallas implementation of Model.forward. `inp` is accepted but unused,
    matching the PyTorch module. `use_bf16=True` casts the matmul operands to
    bfloat16 (f32 accumulate) for higher MXU throughput when tolerable."""
    x1 = jnp.asarray(x1)
    x2 = jnp.asarray(x2)
    x3 = jnp.asarray(x3)

    M, K = x1.shape
    K2, N = x2.shape
    assert K == K2 and x3.shape == (M, K)
    out_dtype = jnp.result_type(x1.dtype, x2.dtype)

    # Small-shape fast path (the original module uses 3x3 matrices): fixed
    # pallas_call/pipeline overhead + 128-padding dwarf the work; XLA wins.
    if (2 * M * N * K) < 4_000_000 or min(M, N, K) < 8:
        return ((x1 + x3) @ x2).astype(out_dtype)

    # Pad every dim to a multiple of 128: all blocks satisfy the (8,128) rule,
    # the output stays lane-dense (unmasked vst), and we never fall back to a
    # full-extent mega-block that could exceed v7x's 64 MiB VMEM.
    Mp, Kp, Np = (_round_up(d, _LANE) for d in (M, K, N))

    tm = _pick_tile(Mp, (512, 256, 128))
    tn = _pick_tile(Np, (512, 256, 128))
    tk = _pick_tile(Kp, (2048, 1024, 512, 256, 128))

    # Keep >= 2 parallel output blocks so both v7x TensorCores get work
    # (no-op on single-TC v5e/v6e).
    if (Mp // tm) * (Np // tn) < 2:
        if tm >= 256 and (tm // 2) % 8 == 0:
            tm //= 2
        elif tn >= 256 and (tn // 2) % _LANE == 0:
            tn //= 2

    n_col_blocks = Np // tn
    # x1/x3 are re-streamed once per column block; folding them into a single
    # LHS (S = x1 + x3) halves LHS HBM traffic once it is re-read >= 3 times.
    pre_summed = n_col_blocks >= 3
    direct_out = out_dtype == jnp.float32

    vmem_limit = _vmem_limit_bytes()
    in_itemsize = 2 if use_bf16 else jnp.dtype(x1.dtype).itemsize

    def _footprint(tk_):
        n_lhs = 1 if pre_summed else 2
        f = 2 * n_lhs * tm * tk_ * in_itemsize      # double-buffered LHS input(s)
        f += 2 * tk_ * tn * in_itemsize             # double-buffered RHS
        f += 2 * tm * tn * jnp.dtype(out_dtype).itemsize
        if not direct_out:
            f += tm * tn * 4                        # f32 accumulator scratch
        return f

    while (_footprint(tk) > int(0.8 * vmem_limit)
           and tk >= 256 and (tk // 2) % _LANE == 0):
        tk //= 2

    def _pad2(a, rows, cols):
        pr, pc = rows - a.shape[0], cols - a.shape[1]
        if pr or pc:
            a = jnp.pad(a, ((0, pr), (0, pc)))
        return a

    x2p = _pad2(x2, Kp, Np)
    if pre_summed:
        lhs = _pad2(x1 + x3, Mp, Kp)    # one cheap XLA elementwise pass
        operands = (lhs, x2p)
        in_specs = [
            pl.BlockSpec((tm, tk), lambda i, j, k: (i, k)),   # S = x1 + x3
            pl.BlockSpec((tk, tn), lambda i, j, k: (k, j)),   # x2
        ]
    else:
        operands = (_pad2(x1, Mp, Kp), x2p, _pad2(x3, Mp, Kp))
        in_specs = [
            pl.BlockSpec((tm, tk), lambda i, j, k: (i, k)),   # x1
            pl.BlockSpec((tk, tn), lambda i, j, k: (k, j)),   # x2
            pl.BlockSpec((tm, tk), lambda i, j, k: (i, k)),   # x3
        ]

    if use_bf16:
        operands = tuple(op.astype(jnp.bfloat16) for op in operands)

    scratch = [] if direct_out else [pltpu.VMEM((tm, tn), jnp.float32)]

    out = pl.pallas_call(
        _make_kernel(pre_summed, direct_out),
        out_shape=jax.ShapeDtypeStruct((Mp, Np), out_dtype),
        grid_spec=pltpu.PrefetchScalarGridSpec(
            num_scalar_prefetch=0,
            grid=(Mp // tm, Np // tn, Kp // tk),
            in_specs=in_specs,
            out_specs=pl.BlockSpec((tm, tn), lambda i, j, k: (i, j)),
            scratch_shapes=scratch,
        ),
        compiler_params=pltpu.CompilerParams(
            # M/N independent (megacore / 2-TC shardable); K is the reduction.
            dimension_semantics=("parallel", "parallel", "arbitrary"),
            vmem_limit_bytes=vmem_limit,
        ),
    )(*operands)

    if (Mp, Np) != (M, N):
        out = out[:M, :N]
    return out


if __name__ == "__main__":
    key = jax.random.PRNGKey(0)
    k1, k2, k3, k4 = jax.random.split(key, 4)

    # 1) Tiled path: pre-summed single LHS, 3 column blocks, 3-step K
    #    reduction, f32 direct-into-output accumulation.
    M, K, N = 256, 1536, 384
    x1 = jax.random.normal(k1, (M, K), dtype=jnp.float32)
    x2 = jax.random.normal(k2, (K, N), dtype=jnp.float32)
    x3 = jax.random.normal(k3, (M, K), dtype=jnp.float32)
    inp = jax.random.normal(k4, (M, K), dtype=jnp.float32)   # unused, as in the module
    out = jax.block_until_ready(model_forward(x1, x2, x3, inp))
    ref = (jnp.dot(x1, x2, precision=jax.lax.Precision.HIGHEST)
           + jnp.dot(x3, x2, precision=jax.lax.Precision.HIGHEST))
    assert out.shape == (M, N)
    assert jnp.allclose(out, ref, atol=1e-1, rtol=1e-2), "mismatch (tiled / pre-summed)"

    # 2) Fused two-LHS kernel path (single column block, tm halved for 2 TCs).
    a1 = jax.random.normal(jax.random.PRNGKey(7), (256, 1024), dtype=jnp.float32)
    a2 = jax.random.normal(jax.random.PRNGKey(8), (1024, 256), dtype=jnp.float32)
    a3 = jax.random.normal(jax.random.PRNGKey(9), (256, 1024), dtype=jnp.float32)
    out2 = jax.block_until_ready(model_forward(a1, a2, a3))
    ref2 = (jnp.dot(a1, a2, precision=jax.lax.Precision.HIGHEST)
            + jnp.dot(a3, a2, precision=jax.lax.Precision.HIGHEST))
    assert jnp.allclose(out2, ref2, atol=1e-1, rtol=1e-2), "mismatch (fused LHS)"

    # 3) Non-divisible dims: exercises the zero-pad + slice-back path.
    b1 = jax.random.normal(jax.random.PRNGKey(11), (100, 200), dtype=jnp.float32)
    b2 = jax.random.normal(jax.random.PRNGKey(12), (200, 200), dtype=jnp.float32)
    b3 = jax.random.normal(jax.random.PRNGKey(13), (100, 200), dtype=jnp.float32)
    out3 = jax.block_until_ready(model_forward(b1, b2, b3))
    ref3 = (jnp.dot(b1, b2, precision=jax.lax.Precision.HIGHEST)
            + jnp.dot(b3, b2, precision=jax.lax.Precision.HIGHEST))
    assert out3.shape == (100, 200)
    assert jnp.allclose(out3, ref3, atol=5e-2, rtol=1e-2), "mismatch (padded)"

    # 4) Module-scale 3x3 (same shapes as the PyTorch spec): small-shape fast path.
    c1 = jax.random.normal(jax.random.PRNGKey(21), (3, 3), dtype=jnp.float32)
    c2 = jax.random.normal(jax.random.PRNGKey(22), (3, 3), dtype=jnp.float32)
    c3 = jax.random.normal(jax.random.PRNGKey(23), (3, 3), dtype=jnp.float32)
    ci = jax.random.normal(jax.random.PRNGKey(24), (3, 3), dtype=jnp.float32)
    out4 = jax.block_until_ready(model_forward(c1, c2, c3, ci))
    ref4 = c1 @ c2 + c3 @ c2
    assert jnp.allclose(out4, ref4, atol=1e-4, rtol=1e-4), "mismatch (3x3 fast path)"

    print("KERNEL_OK")
</pallas_src>

<mosaic_0001>
module attributes {stable_mosaic.version = 11 : i64} {
  func.func @kernel(%arg0: i32, %arg1: i32, %arg2: i32, %arg3: memref<256x512xf32, #tpu.memory_space<vmem>>, %arg4: memref<512x128xf32, #tpu.memory_space<vmem>>, %arg5: memref<256x128xf32, #tpu.memory_space<vmem>>) attributes {dimension_semantics = [#tpu.dimension_semantics<parallel>, #tpu.dimension_semantics<parallel>, #tpu.dimension_semantics<arbitrary>], iteration_bounds = array<i64: 1, 3, 3>, scalar_prefetch = 0 : i64, scratch_operands = 0 : i64, tpu.core_type = #tpu.core_type<tc>, window_params = [{transform_indices = @transform_0, window_bounds = array<i64: 256, 512>}, {transform_indices = @transform_1, window_bounds = array<i64: 512, 128>}, {transform_indices = @transform_2, window_bounds = array<i64: 256, 128>}]} {
    %c0 = arith.constant 0 : index
    %c0_0 = arith.constant 0 : index
    %0 = vector.load %arg3[%c0, %c0_0] : memref<256x512xf32, #tpu.memory_space<vmem>>, vector<256x512xf32>
    %c0_i32 = arith.constant 0 : i32
    %1 = arith.cmpi eq, %arg2, %c0_i32 : i32
    %2 = arith.extui %1 : i1 to i32
    %c0_i32_1 = arith.constant 0 : i32
    %3 = arith.cmpi ne, %2, %c0_i32_1 : i32
    scf.if %3 {
      %cst_8 = arith.constant 0.000000e+00 : f32
      %9 = vector.broadcast %cst_8 : f32 to vector<256x128xf32>
      %c0_9 = arith.constant 0 : index
      %c0_10 = arith.constant 0 : index
      %10 = vector.load %arg5[%c0_9, %c0_10] : memref<256x128xf32, #tpu.memory_space<vmem>>, vector<256x128xf32>
      tpu.vector_store %arg5[%c0_9, %c0_10], %9 {strides = array<i32>} : memref<256x128xf32, #tpu.memory_space<vmem>>, vector<256x128xf32>,
    } else {
    }
    %c0_2 = arith.constant 0 : index
    %c0_3 = arith.constant 0 : index
    %4 = vector.load %arg5[%c0_2, %c0_3] : memref<256x128xf32, #tpu.memory_space<vmem>>, vector<256x128xf32>
    %c0_4 = arith.constant 0 : index
    %c0_5 = arith.constant 0 : index
    %5 = vector.load %arg4[%c0_4, %c0_5] : memref<512x128xf32, #tpu.memory_space<vmem>>, vector<512x128xf32>
    %cst = arith.constant dense<0.000000e+00> : vector<256x128xf32>
    %6 = tpu.matmul %0, %5, %cst {dimension_numbers = #tpu.dot_dimension_numbers<[1], [0], [0], [1], [0, 0, 1, 1], [], []>} : vector<256x512xf32>, vector<512x128xf32>, vector<256x128xf32> -> vector<256x128xf32>
    %7 = arith.addf %4, %6 : vector<256x128xf32>
    %c0_6 = arith.constant 0 : index
    %c0_7 = arith.constant 0 : index
    %8 = vector.load %arg5[%c0_6, %c0_7] : memref<256x128xf32, #tpu.memory_space<vmem>>, vector<256x128xf32>
    tpu.vector_store %arg5[%c0_6, %c0_7], %7 {strides = array<i32>} : memref<256x128xf32, #tpu.memory_space<vmem>>, vector<256x128xf32>,
    return
  }
  func.func @transform_0(%arg0: i32, %arg1: i32, %arg2: i32) -> (i32, i32) {
    %c0_i32 = arith.constant 0 : i32
    return %arg0, %arg2 : i32, i32
  }
  func.func @transform_1(%arg0: i32, %arg1: i32, %arg2: i32) -> (i32, i32) {
    %c0_i32 = arith.constant 0 : i32
    return %arg2, %arg1 : i32, i32
  }
  func.func @transform_2(%arg0: i32, %arg1: i32, %arg2: i32) -> (i32, i32) {
    %c0_i32 = arith.constant 0 : i32
    return %arg0, %arg1 : i32, i32
  }
}

</mosaic_0001>

<llo_original>
// kernel: tpu_custom_call.1
$region0: #{tpu_custom_call.1}
  #allocation0 [shape = 'u32[]', space=smem, size = 0x4, offset = 0x4, fixed_abs, tag = 'smem constant byte address 0x4 - core index']
  #allocation1 [shape = 'u32[144,128]{1,0:T(1,128)}', space=vmem, size = 0x12000, scoped, tag = 'internal scratch']
  %s0 = inlined_call_operand.hbm [shape: f32[256,1536], index: 0, kind: input, shape index: {}]
  %s1 = inlined_call_operand.hbm [shape: f32[1536,384], index: 1, kind: input, shape index: {}]
  %s2 = inlined_call_operand.hbm [shape: f32[256,384], index: 2, kind: output, shape index: {}]
  %s3 = sld [smem:[#allocation0]]
  $region53: #{tpu_custom_call.1} parent=0
    _
  %s5 = ssub.s32 1, %s3
  %s6 = scalar_select 0, %s5, %s3
  $region1: #{tpu_custom_call.1} parent=0
    #allocation2 [shape = 'u8[1048576]{0}', space=vmem, size = 0x100000, scoped, tag = 'input window, operand 0']
    #allocation3 [shape = 's32[2]{0}', space=sflag, size = 0x8, scoped, tag = 'scoped memory for tpu_custom_call.1']
    #allocation4 [shape = 's32[2]{0}', space=sflag, size = 0x8, scoped, tag = 'scoped memory for tpu_custom_call.1']
    #allocation5 [shape = 'u8[524288]{0}', space=vmem, size = 0x80000, scoped, tag = 'input window, operand 1']
    #allocation6 [shape = 's32[2]{0}', space=sflag, size = 0x8, scoped, tag = 'scoped memory for tpu_custom_call.1']
    #allocation7 [shape = 'u8[262144]{0}', space=vmem, size = 0x40000, scoped, tag = 'output window, operand 0']
    %7 = vsyncpa [#allocation3], 0
    %s8 = scalar_lea.sflag [#allocation3], 1
    %9 = vsyncpa %s8, 0
    %10 = vsyncpa [#allocation6], 0
    %s11 = scalar_lea.sflag [#allocation6], 1
    %12 = vsyncpa %s11, 0
    %13 = vsyncpa [#allocation4], 0
    %s14 = scalar_lea.sflag [#allocation4], 1
    %15 = vsyncpa %s14, 0
    loop: start=0, step=1, limit=11
    $region2: #{tpu_custom_call.1} parent=1 // loop_pre_header
      _
    $region3: #{tpu_custom_call.1} parent=1 // loop_header
      %s17 = sphi 0, %s21
      %p18 = scmp.ge.s32.totalorder %s17, 11
      %s24 = sphi 0, %s43
      %s25 = sphi 0, %s39
      %s26 = sphi 0, %s35
      %s27 = sphi 0, %s24
      %s28 = sphi 0, %s25
      %s29 = sphi 0, %s26
      %s30 = sphi 0, %s27
      %s31 = sphi 0, %s28
      %s32 = sphi 0, %s29
      %s48 = sphi 0, %s50
      %s51 = sphi 0, %s48
      %s52 = sphi 0, %s51
      %s68 = sphi 0, %s52
      %s76 = sphi 0, %s78
      %s79 = sphi 0, %s76
      %s80 = sphi 0, %s79
      %s96 = sphi 0, %s80
      %s104 = sphi 0, %s106
      %s107 = sphi 0, %s104
      %s108 = sphi 0, %s107
      %s124 = sphi 0, %s108
    $region4: #{tpu_custom_call.1} parent=1 // loop_header_branch
      %20 = sbr.rel (%p18) target = $region8
    $region5: #{tpu_custom_call.1} parent=1 // loop_body
      %s22 = ssub.s32 %s17, 1
      %s23 = ssub.s32 %s17, 2
      %s33 = sadd.s32 1, %s26
      %p34 = scmp.ge.s32.totalorder %s33, 3
      %s35 = scalar_select %p34, 0, %s33
      %s36 = sadd.s32 1, %s25
      %s37 = scalar_select %p34, %s36, %s25
      %p38 = scmp.ge.s32.totalorder %s37, 3
      %s39 = scalar_select %p38, 0, %s37
      %s40 = sadd.s32 1, %s24
      %s41 = scalar_select %p38, %s40, %s24
      %p42 = scmp.ge.s32.totalorder %s41, 1
      %s43 = scalar_select %p42, 0, %s41
      %s44 = ssub.s32 %s24, %s43
      %s45 = ssub.s32 %s26, %s35
      %s46 = sor.u32 %s44, %s45
      %p47 = scmp.eq.s32.totalorder %s46, 0
      %s49 = sadd.s32 %s48, 1
      %s50 = scalar_select %p47, %s48, %s49
      %p53 = pneg %p47
      %p54 = scmp.eq.s32.totalorder %s17, 8
      %p55 = por %p53, %p54
      %p56 = scmp.ne.s32.totalorder %s48, %s51
      %p57 = scmp.eq.s32.totalorder %s17, 0
      %p58 = por %p56, %p57
      %p59 = scmp.ne.s32.totalorder %s48, %s51
      %p60 = scmp.eq.s32.totalorder %s22, 8
      %p61 = por %p59, %p60
      %p62 = scmp.ne.s32.totalorder %s51, %s52
      %p63 = scmp.eq.s32.totalorder %s22, 0
      %p64 = por %p62, %p63
      %p65 = scmp.ne.s32.totalorder %s51, %s52
      %p66 = scmp.eq.s32.totalorder %s23, 8
      %p67 = por %p65, %p66
      %p69 = scmp.ne.s32.totalorder %s52, %s68
      %p70 = scmp.eq.s32.totalorder %s23, 0
      %p71 = por %p69, %p70
      %s72 = ssub.s32 %s26, %s35
      %s73 = ssub.s32 %s25, %s39
      %s74 = sor.u32 %s72, %s73
      %p75 = scmp.eq.s32.totalorder %s74, 0
      %s77 = sadd.s32 %s76, 1
      %s78 = scalar_select %p75, %s76, %s77
      %p81 = pneg %p75
      %p82 = scmp.eq.s32.totalorder %s17, 8
      %p83 = por %p81, %p82
      %p84 = scmp.ne.s32.totalorder %s76, %s79
      %p85 = scmp.eq.s32.totalorder %s17, 0
      %p86 = por %p84, %p85
      %p87 = scmp.ne.s32.totalorder %s76, %s79
      %p88 = scmp.eq.s32.totalorder %s22, 8
      %p89 = por %p87, %p88
      %p90 = scmp.ne.s32.totalorder %s79, %s80
      %p91 = scmp.eq.s32.totalorder %s22, 0
      %p92 = por %p90, %p91
      %p93 = scmp.ne.s32.totalorder %s79, %s80
      %p94 = scmp.eq.s32.totalorder %s23, 8
      %p95 = por %p93, %p94
      %p97 = scmp.ne.s32.totalorder %s80, %s96
      %p98 = scmp.eq.s32.totalorder %s23, 0
      %p99 = por %p97, %p98
      %s100 = ssub.s32 %s24, %s43
      %s101 = ssub.s32 %s25, %s39
      %s102 = sor.u32 %s100, %s101
      %p103 = scmp.eq.s32.totalorder %s102, 0
      %s105 = sadd.s32 %s104, 1
      %s106 = scalar_select %p103, %s104, %s105
      %p109 = pneg %p103
      %p110 = scmp.eq.s32.totalorder %s17, 8
      %p111 = por %p109, %p110
      %p112 = scmp.ne.s32.totalorder %s104, %s107
      %p113 = scmp.eq.s32.totalorder %s17, 0
      %p114 = por %p112, %p113
      %p115 = scmp.ne.s32.totalorder %s104, %s107
      %p116 = scmp.eq.s32.totalorder %s22, 8
      %p117 = por %p115, %p116
      %p118 = scmp.ne.s32.totalorder %s107, %s108
      %p119 = scmp.eq.s32.totalorder %s22, 0
      %p120 = por %p118, %p119
      %p121 = scmp.ne.s32.totalorder %s107, %s108
      %p122 = scmp.eq.s32.totalorder %s23, 8
      %p123 = por %p121, %p122
      %p125 = scmp.ne.s32.totalorder %s108, %s124
      %p126 = scmp.eq.s32.totalorder %s23, 0
      %p127 = por %p125, %p126
      %p128 = scmp.le.s32.totalorder 1, %s17
      %p129 = scmp.lt.s32.totalorder %s17, 10
      %p130 = pnand %p128, %p129
      %p131 = pneg %p130
      // Predicated region
      $region9: #{tpu_custom_call.1} parent=5 // pred_check
        _
      $region10: #{tpu_custom_call.1} parent=5 // pred_check_branch
        %133 = sbr.rel (%p130) target = $region12
      $region11: #{tpu_custom_call.1} parent=5 // pred_region
        %s134 = ssub.s32 %s17, 1
      $region12: #{tpu_custom_call.1} parent=5 // pred_fallthru
        _
      %p135 = scmp.lt.s32.totalorder %s17, 9
      // Predicated region
      $region13: #{tpu_custom_call.1} parent=5 // pred_check
        %p136 = pneg %p135
      $region14: #{tpu_custom_call.1} parent=5 // pred_check_branch
        %138 = sbr.rel (%p136) target = $region16
      $region15: #{tpu_custom_call.1} parent=5 // pred_region
        // Predicated region
        $region17: #{tpu_custom_call.1} parent=15 // pred_check
          %p139 = pneg %p58
        $region18: #{tpu_custom_call.1} parent=15 // pred_check_branch
          %141 = sbr.rel (%p139) target = $region20
        $region19: #{tpu_custom_call.1} parent=15 // pred_region
          %s142 = sand.u32 %s48, 1
          %s143 = scalar_lea.sflag [#allocation3], %s142
          %s144 = sand.u32 %s48, 1
          %s145 = smul.addr %s144, 1024
          %s146 = scalar_lea.vmem [#allocation2], %s145
          %s147 = smul.u32 32, %s24
          %s148 = smul.u32 4, %s26
          %s150 = ssub.s32 16384, 16384
          %151 = vsyncadd %s143, %s150
          %s152 = smul.addr %s147, 12
          %s153 = sadd.s32 %s148, %s152
          %s154 = smul.addr %s153, 128
          %s155 = scalar_lea.hbm %s0, %s154
          %s156 = sshll.u32 %s146, 4
          %s157 = int_to_ptr.vmem [resolvable:$true] %s156
          %162 = dma.hbm_to_vmem [thread:$0]  %s155, 16384, %s157, %s143, 1536, 512, 32
        $region20: #{tpu_custom_call.1} parent=15 // pred_fallthru
          _
        // Predicated region
        $region21: #{tpu_custom_call.1} parent=15 // pred_check
          %p163 = pneg %p86
        $region22: #{tpu_custom_call.1} parent=15 // pred_check_branch
          %165 = sbr.rel (%p163) target = $region24
        $region23: #{tpu_custom_call.1} parent=15 // pred_region
          %s166 = sand.u32 %s76, 1
          %s167 = scalar_lea.sflag [#allocation6], %s166
          %s168 = sand.u32 %s76, 1
          %s169 = smul.addr %s168, 512
          %s170 = scalar_lea.vmem [#allocation5], %s169
          %s171 = smul.u32 64, %s26
          %s173 = ssub.s32 8192, 8192
          %174 = vsyncadd %s167, %s173
          %s175 = smul.addr %s171, 3
          %s176 = sadd.s32 %s25, %s175
          %s177 = smul.addr %s176, 128
          %s178 = scalar_lea.hbm %s1, %s177
          %s179 = sshll.u32 %s170, 4
          %s180 = int_to_ptr.vmem [resolvable:$true] %s179
          %185 = dma.hbm_to_vmem [thread:$0]  %s178, 8192, %s180, %s167, 384, 128, 8
        $region24: #{tpu_custom_call.1} parent=15 // pred_fallthru
          _
      $region16: #{tpu_custom_call.1} parent=5 // pred_fallthru
        _
      %p186 = scmp.le.s32.totalorder 1, %s17
      %p187 = scmp.lt.s32.totalorder %s17, 10
      %p188 = pnand %p186, %p187
      %p189 = pneg %p188
      // Predicated region
      $region25: #{tpu_custom_call.1} parent=5 // pred_check
        _
      $region26: #{tpu_custom_call.1} parent=5 // pred_check_branch
        %191 = sbr.rel (%p188) target = $region28
      $region27: #{tpu_custom_call.1} parent=5 // pred_region
        %s192 = ssub.s32 %s17, 1
        %s193 = sand.u32 %s51, 1
        %s194 = scalar_lea.sflag [#allocation3], %s193
        %s195 = sand.u32 %s51, 1
        %s196 = smul.addr %s195, 1024
        %s197 = scalar_lea.vmem [#allocation2], %s196
        // Predicated region
        $region29: #{tpu_custom_call.1} parent=27 // pred_check
          %p198 = pneg %p64
        $region30: #{tpu_custom_call.1} parent=27 // pred_check_branch
          %200 = sbr.rel (%p198) target = $region32
        $region31: #{tpu_custom_call.1} parent=27 // pred_region
          %201 = dma.done %s194, 16384
        $region32: #{tpu_custom_call.1} parent=27 // pred_fallthru
          _
        %s202 = sand.u32 %s79, 1
        %s203 = scalar_lea.sflag [#allocation6], %s202
        %s204 = sand.u32 %s79, 1
        %s205 = smul.addr %s204, 512
        %s206 = scalar_lea.vmem [#allocation5], %s205
        // Predicated region
        $region33: #{tpu_custom_call.1} parent=27 // pred_check
          %p207 = pneg %p92
        $region34: #{tpu_custom_call.1} parent=27 // pred_check_branch
          %209 = sbr.rel (%p207) target = $region36
        $region35: #{tpu_custom_call.1} parent=27 // pred_region
          %210 = dma.done %s203, 8192
        $region36: #{tpu_custom_call.1} parent=27 // pred_fallthru
          _
        %s211 = sand.u32 %s51, 1
        %s212 = scalar_lea.sflag [#allocation3], %s211
        %s213 = sand.u32 %s51, 1
        %s214 = smul.addr %s213, 1024
        %s215 = scalar_lea.vmem [#allocation2], %s214
        %p216 = pneg %p64
        %p217 = pneg %p61
        %s218 = sand.u32 %s79, 1
        %s219 = scalar_lea.sflag [#allocation6], %s218
        %s220 = sand.u32 %s79, 1
        %s221 = smul.addr %s220, 512
        %s222 = scalar_lea.vmem [#allocation5], %s221
        %p223 = pneg %p92
        %p224 = pneg %p89
        %p225 = pneg %p120
        %p226 = pneg %p117
        %s227 = sand.u32 %s107, 1
        %s228 = scalar_lea.sflag [#allocation4], %s227
        %s229 = sand.u32 %s107, 1
        %s230 = smul.addr %s229, 256
        %s231 = scalar_lea.vmem [#allocation7], %s230
        %s232 = smul.u32 32, %s27
        %s233 = smul.u32 4, %s29
        %s234 = smul.u32 64, %s29
        %s235 = smul.u32 32, %s27
        %v236 = vld [vmem:[%s197] sm:$0xff]
        %v237 = vld [vmem:[%s197 + $0x8] sm:$0xff]
        %v238 = vld [vmem:[%s197 + $0x10] sm:$0xff]
        %v239 = vld [vmem:[%s197 + $0x18] sm:$0xff]
        %v240 = vld [vmem:[%s197 + $0x20] sm:$0xff]
        %v241 = vld [vmem:[%s197 + $0x28] sm:$0xff]
        %v242 = vld [vmem:[%s197 + $0x30] sm:$0xff]
        %v243 = vld [vmem:[%s197 + $0x38] sm:$0xff]
        %v244 = vld [vmem:[%s197 + $0x40] sm:$0xff]
        %v245 = vld [vmem:[%s197 + $0x48] sm:$0xff]
        %v246 = vld [vmem:[%s197 + $0x50] sm:$0xff]
        %v247 = vld [vmem:[%s197 + $0x58] sm:$0xff]
        %v248 = vld [vmem:[%s197 + $0x60] sm:$0xff]
        %v249 = vld [vmem:[%s197 + $0x68] sm:$0xff]
        %v250 = vld [vmem:[%s197 + $0x70] sm:$0xff]
        %v251 = vld [vmem:[%s197 + $0x78] sm:$0xff]
        %v252 = vld [vmem:[%s197 + $0x80] sm:$0xff]
        %v253 = vld [vmem:[%s197 + $0x88] sm:$0xff]
        %v254 = vld [vmem:[%s197 + $0x90] sm:$0xff]
        %v255 = vld [vmem:[%s197 + $0x98] sm:$0xff]
        %v256 = vld [vmem:[%s197 + $0xa0] sm:$0xff]
        %v257 = vld [vmem:[%s197 + $0xa8] sm:$0xff]
        %v258 = vld [vmem:[%s197 + $0xb0] sm:$0xff]
        %v259 = vld [vmem:[%s197 + $0xb8] sm:$0xff]
        %v260 = vld [vmem:[%s197 + $0xc0] sm:$0xff]
        %v261 = vld [vmem:[%s197 + $0xc8] sm:$0xff]
        %v262 = vld [vmem:[%s197 + $0xd0] sm:$0xff]
        %v263 = vld [vmem:[%s197 + $0xd8] sm:$0xff]
        %v264 = vld [vmem:[%s197 + $0xe0] sm:$0xff]
        %v265 = vld [vmem:[%s197 + $0xe8] sm:$0xff]
        %v266 = vld [vmem:[%s197 + $0xf0] sm:$0xff]
        %v267 = vld [vmem:[%s197 + $0xf8] sm:$0xff]
        %v268 = vld [vmem:[%s197 + $0x100] sm:$0xff]
        %v269 = vld [vmem:[%s197 + $0x108] sm:$0xff]
        %v270 = vld [vmem:[%s197 + $0x110] sm:$0xff]
        %v271 = vld [vmem:[%s197 + $0x118] sm:$0xff]
        %v272 = vld [vmem:[%s197 + $0x120] sm:$0xff]
        %v273 = vld [vmem:[%s197 + $0x128] sm:$0xff]
        %v274 = vld [vmem:[%s197 + $0x130] sm:$0xff]
        %v275 = vld [vmem:[%s197 + $0x138] sm:$0xff]
        %v276 = vld [vmem:[%s197 + $0x140] sm:$0xff]
        %v277 = vld [vmem:[%s197 + $0x148] sm:$0xff]
        %v278 = vld [vmem:[%s197 + $0x150] sm:$0xff]
        %v279 = vld [vmem:[%s197 + $0x158] sm:$0xff]
        %v280 = vld [vmem:[%s197 + $0x160] sm:$0xff]
        %v281 = vld [vmem:[%s197 + $0x168] sm:$0xff]
        %v282 = vld [vmem:[%s197 + $0x170] sm:$0xff]
        %v283 = vld [vmem:[%s197 + $0x178] sm:$0xff]
        %v284 = vld [vmem:[%s197 + $0x180] sm:$0xff]
        %v285 = vld [vmem:[%s197 + $0x188] sm:$0xff]
        %v286 = vld [vmem:[%s197 + $0x190] sm:$0xff]
        %v287 = vld [vmem:[%s197 + $0x198] sm:$0xff]
        %v288 = vld [vmem:[%s197 + $0x1a0] sm:$0xff]
        %v289 = vld [vmem:[%s197 + $0x1a8] sm:$0xff]
        %v290 = vld [vmem:[%s197 + $0x1b0] sm:$0xff]
        %v291 = vld [vmem:[%s197 + $0x1b8] sm:$0xff]
        %v292 = vld [vmem:[%s197 + $0x1c0] sm:$0xff]
        %v293 = vld [vmem:[%s197 + $0x1c8] sm:$0xff]
        %v294 = vld [vmem:[%s197 + $0x1d0] sm:$0xff]
        %v295 = vld [vmem:[%s197 + $0x1d8] sm:$0xff]
        %v296 = vld [vmem:[%s197 + $0x1e0] sm:$0xff]
        %v297 = vld [vmem:[%s197 + $0x1e8] sm:$0xff]
        %v298 = vld [vmem:[%s197 + $0x1f0] sm:$0xff]
        %v299 = vld [vmem:[%s197 + $0x1f8] sm:$0xff]
        %v300 = vld [vmem:[%s197 + $0x200] sm:$0xff]
        %v301 = vld [vmem:[%s197 + $0x208] sm:$0xff]
        %v302 = vld [vmem:[%s197 + $0x210] sm:$0xff]
        %v303 = vld [vmem:[%s197 + $0x218] sm:$0xff]
        %v304 = vld [vmem:[%s197 + $0x220] sm:$0xff]
        %v305 = vld [vmem:[%s197 + $0x228] sm:$0xff]
        %v306 = vld [vmem:[%s197 + $0x230] sm:$0xff]
        %v307 = vld [vmem:[%s197 + $0x238] sm:$0xff]
        %v308 = vld [vmem:[%s197 + $0x240] sm:$0xff]
        %v309 = vld [vmem:[%s197 + $0x248] sm:$0xff]
        %v310 = vld [vmem:[%s197 + $0x250] sm:$0xff]
        %v311 = vld [vmem:[%s197 + $0x258] sm:$0xff]
        %v312 = vld [vmem:[%s197 + $0x260] sm:$0xff]
        %v313 = vld [vmem:[%s197 + $0x268] sm:$0xff]
        %v314 = vld [vmem:[%s197 + $0x270] sm:$0xff]
        %v315 = vld [vmem:[%s197 + $0x278] sm:$0xff]
        %v316 = vld [vmem:[%s197 + $0x280] sm:$0xff]
        %v317 = vld [vmem:[%s197 + $0x288] sm:$0xff]
        %v318 = vld [vmem:[%s197 + $0x290] sm:$0xff]
        %v319 = vld [vmem:[%s197 + $0x298] sm:$0xff]
        %v320 = vld [vmem:[%s197 + $0x2a0] sm:$0xff]
        %v321 = vld [vmem:[%s197 + $0x2a8] sm:$0xff]
        %v322 = vld [vmem:[%s197 + $0x2b0] sm:$0xff]
        %v323 = vld [vmem:[%s197 + $0x2b8] sm:$0xff]
        %v324 = vld [vmem:[%s197 + $0x2c0] sm:$0xff]
        %v325 = vld [vmem:[%s197 + $0x2c8] sm:$0xff]
        %v326 = vld [vmem:[%s197 + $0x2d0] sm:$0xff]
        %v327 = vld [vmem:[%s197 + $0x2d8] sm:$0xff]
        %v328 = vld [vmem:[%s197 + $0x2e0] sm:$0xff]
        %v329 = vld [vmem:[%s197 + $0x2e8] sm:$0xff]
        %v330 = vld [vmem:[%s197 + $0x2f0] sm:$0xff]
        %v331 = vld [vmem:[%s197 + $0x2f8] sm:$0xff]
        %v332 = vld [vmem:[%s197 + $0x300] sm:$0xff]
        %v333 = vld [vmem:[%s197 + $0x308] sm:$0xff]
        %v334 = vld [vmem:[%s197 + $0x310] sm:$0xff]
        %v335 = vld [vmem:[%s197 + $0x318] sm:$0xff]
        %v336 = vld [vmem:[%s197 + $0x320] sm:$0xff]
        %v337 = vld [vmem:[%s197 + $0x328] sm:$0xff]
        %v338 = vld [vmem:[%s197 + $0x330] sm:$0xff]
        %v339 = vld [vmem:[%s197 + $0x338] sm:$0xff]
        %v340 = vld [vmem:[%s197 + $0x340] sm:$0xff]
        %v341 = vld [vmem:[%s197 + $0x348] sm:$0xff]
        %v342 = vld [vmem:[%s197 + $0x350] sm:$0xff]
        %v343 = vld [vmem:[%s197 + $0x358] sm:$0xff]
        %v344 = vld [vmem:[%s197 + $0x360] sm:$0xff]
        %v345 = vld [vmem:[%s197 + $0x368] sm:$0xff]
        %v346 = vld [vmem:[%s197 + $0x370] sm:$0xff]
        %v347 = vld [vmem:[%s197 + $0x378] sm:$0xff]
        %v348 = vld [vmem:[%s197 + $0x380] sm:$0xff]
        %v349 = vld [vmem:[%s197 + $0x388] sm:$0xff]
        %v350 = vld [vmem:[%s197 + $0x390] sm:$0xff]
        %v351 = vld [vmem:[%s197 + $0x398] sm:$0xff]
        %v352 = vld [vmem:[%s197 + $0x3a0] sm:$0xff]
        %v353 = vld [vmem:[%s197 + $0x3a8] sm:$0xff]
        %v354 = vld [vmem:[%s197 + $0x3b0] sm:$0xff]
        %v355 = vld [vmem:[%s197 + $0x3b8] sm:$0xff]
        %v356 = vld [vmem:[%s197 + $0x3c0] sm:$0xff]
        %v357 = vld [vmem:[%s197 + $0x3c8] sm:$0xff]
        %v358 = vld [vmem:[%s197 + $0x3d0] sm:$0xff]
        %v359 = vld [vmem:[%s197 + $0x3d8] sm:$0xff]
        %v360 = vld [vmem:[%s197 + $0x3e0] sm:$0xff]
        %v361 = vld [vmem:[%s197 + $0x3e8] sm:$0xff]
        %v362 = vld [vmem:[%s197 + $0x3f0] sm:$0xff]
        %v363 = vld [vmem:[%s197 + $0x3f8] sm:$0xff]
        %p364 = scmp.eq.s32.totalorder %s29, 0
        // Predicated region
        $region37: #{tpu_custom_call.1} parent=27 // pred_check
          %p365 = pneg %p364
        $region38: #{tpu_custom_call.1} parent=27 // pred_check_branch
          %367 = sbr.rel (%p365) target = $region40
        $region39: #{tpu_custom_call.1} parent=27 // pred_region
          %368 = vst [vmem:[%s231] sm:$0xff] 0.0
          %369 = vst [vmem:[%s231 + $0x8] sm:$0xff] 0.0
          %370 = vst [vmem:[%s231 + $0x10] sm:$0xff] 0.0
          %371 = vst [vmem:[%s231 + $0x18] sm:$0xff] 0.0
          %372 = vst [vmem:[%s231 + $0x20] sm:$0xff] 0.0
          %373 = vst [vmem:[%s231 + $0x28] sm:$0xff] 0.0
          %374 = vst [vmem:[%s231 + $0x30] sm:$0xff] 0.0
          %375 = vst [vmem:[%s231 + $0x38] sm:$0xff] 0.0
          %376 = vst [vmem:[%s231 + $0x40] sm:$0xff] 0.0
          %377 = vst [vmem:[%s231 + $0x48] sm:$0xff] 0.0
          %378 = vst [vmem:[%s231 + $0x50] sm:$0xff] 0.0
          %379 = vst [vmem:[%s231 + $0x58] sm:$0xff] 0.0
          %380 = vst [vmem:[%s231 + $0x60] sm:$0xff] 0.0
          %381 = vst [vmem:[%s231 + $0x68] sm:$0xff] 0.0
          %382 = vst [vmem:[%s231 + $0x70] sm:$0xff] 0.0
          %383 = vst [vmem:[%s231 + $0x78] sm:$0xff] 0.0
          %384 = vst [vmem:[%s231 + $0x80] sm:$0xff] 0.0
          %385 = vst [vmem:[%s231 + $0x88] sm:$0xff] 0.0
          %386 = vst [vmem:[%s231 + $0x90] sm:$0xff] 0.0
          %387 = vst [vmem:[%s231 + $0x98] sm:$0xff] 0.0
          %388 = vst [vmem:[%s231 + $0xa0] sm:$0xff] 0.0
          %389 = vst [vmem:[%s231 + $0xa8] sm:$0xff] 0.0
          %390 = vst [vmem:[%s231 + $0xb0] sm:$0xff] 0.0
          %391 = vst [vmem:[%s231 + $0xb8] sm:$0xff] 0.0
          %392 = vst [vmem:[%s231 + $0xc0] sm:$0xff] 0.0
          %393 = vst [vmem:[%s231 + $0xc8] sm:$0xff] 0.0
          %394 = vst [vmem:[%s231 + $0xd0] sm:$0xff] 0.0
          %395 = vst [vmem:[%s231 + $0xd8] sm:$0xff] 0.0
          %396 = vst [vmem:[%s231 + $0xe0] sm:$0xff] 0.0
          %397 = vst [vmem:[%s231 + $0xe8] sm:$0xff] 0.0
          %398 = vst [vmem:[%s231 + $0xf0] sm:$0xff] 0.0
          %399 = vst [vmem:[%s231 + $0xf8] sm:$0xff] 0.0
        $region40: #{tpu_custom_call.1} parent=27 // pred_fallthru
          _
        %v400 = vld [vmem:[%s231] sm:$0xff]
        %v401 = vld [vmem:[%s231 + $0x8] sm:$0xff]
        %v402 = vld [vmem:[%s231 + $0x10] sm:$0xff]
        %v403 = vld [vmem:[%s231 + $0x18] sm:$0xff]
        %v404 = vld [vmem:[%s231 + $0x20] sm:$0xff]
        %v405 = vld [vmem:[%s231 + $0x28] sm:$0xff]
        %v406 = vld [vmem:[%s231 + $0x30] sm:$0xff]
        %v407 = vld [vmem:[%s231 + $0x38] sm:$0xff]
        %v408 = vld [vmem:[%s231 + $0x40] sm:$0xff]
        %v409 = vld [vmem:[%s231 + $0x48] sm:$0xff]
        %v410 = vld [vmem:[%s231 + $0x50] sm:$0xff]
        %v411 = vld [vmem:[%s231 + $0x58] sm:$0xff]
        %v412 = vld [vmem:[%s231 + $0x60] sm:$0xff]
        %v413 = vld [vmem:[%s231 + $0x68] sm:$0xff]
        %v414 = vld [vmem:[%s231 + $0x70] sm:$0xff]
        %v415 = vld [vmem:[%s231 + $0x78] sm:$0xff]
        %v416 = vld [vmem:[%s231 + $0x80] sm:$0xff]
        %v417 = vld [vmem:[%s231 + $0x88] sm:$0xff]
        %v418 = vld [vmem:[%s231 + $0x90] sm:$0xff]
        %v419 = vld [vmem:[%s231 + $0x98] sm:$0xff]
        %v420 = vld [vmem:[%s231 + $0xa0] sm:$0xff]
        %v421 = vld [vmem:[%s231 + $0xa8] sm:$0xff]
        %v422 = vld [vmem:[%s231 + $0xb0] sm:$0xff]
        %v423 = vld [vmem:[%s231 + $0xb8] sm:$0xff]
        %v424 = vld [vmem:[%s231 + $0xc0] sm:$0xff]
        %v425 = vld [vmem:[%s231 + $0xc8] sm:$0xff]
        %v426 = vld [vmem:[%s231 + $0xd0] sm:$0xff]
        %v427 = vld [vmem:[%s231 + $0xd8] sm:$0xff]
        %v428 = vld [vmem:[%s231 + $0xe0] sm:$0xff]
        %v429 = vld [vmem:[%s231 + $0xe8] sm:$0xff]
        %v430 = vld [vmem:[%s231 + $0xf0] sm:$0xff]
        %v431 = vld [vmem:[%s231 + $0xf8] sm:$0xff]
        %v432 = vld [vmem:[%s206] sm:$0xff]
        %v433 = vld [vmem:[%s206 + $0x8] sm:$0xff]
        %v434 = vld [vmem:[%s206 + $0x10] sm:$0xff]
        %v435 = vld [vmem:[%s206 + $0x18] sm:$0xff]
        %v436 = vld [vmem:[%s206 + $0x20] sm:$0xff]
        %v437 = vld [vmem:[%s206 + $0x28] sm:$0xff]
        %v438 = vld [vmem:[%s206 + $0x30] sm:$0xff]
        %v439 = vld [vmem:[%s206 + $0x38] sm:$0xff]
        %v440 = vld [vmem:[%s206 + $0x40] sm:$0xff]
        %v441 = vld [vmem:[%s206 + $0x48] sm:$0xff]
        %v442 = vld [vmem:[%s206 + $0x50] sm:$0xff]
        %v443 = vld [vmem:[%s206 + $0x58] sm:$0xff]
        %v444 = vld [vmem:[%s206 + $0x60] sm:$0xff]
        %v445 = vld [vmem:[%s206 + $0x68] sm:$0xff]
        %v446 = vld [vmem:[%s206 + $0x70] sm:$0xff]
        %v447 = vld [vmem:[%s206 + $0x78] sm:$0xff]
        %v448 = vld [vmem:[%s206 + $0x80] sm:$0xff]
        %v449 = vld [vmem:[%s206 + $0x88] sm:$0xff]
        %v450 = vld [vmem:[%s206 + $0x90] sm:$0xff]
        %v451 = vld [vmem:[%s206 + $0x98] sm:$0xff]
        %v452 = vld [vmem:[%s206 + $0xa0] sm:$0xff]
        %v453 = vld [vmem:[%s206 + $0xa8] sm:$0xff]
        %v454 = vld [vmem:[%s206 + $0xb0] sm:$0xff]
        %v455 = vld [vmem:[%s206 + $0xb8] sm:$0xff]
        %v456 = vld [vmem:[%s206 + $0xc0] sm:$0xff]
        %v457 = vld [vmem:[%s206 + $0xc8] sm:$0xff]
        %v458 = vld [vmem:[%s206 + $0xd0] sm:$0xff]
        %v459 = vld [vmem:[%s206 + $0xd8] sm:$0xff]
        %v460 = vld [vmem:[%s206 + $0xe0] sm:$0xff]
        %v461 = vld [vmem:[%s206 + $0xe8] sm:$0xff]
        %v462 = vld [vmem:[%s206 + $0xf0] sm:$0xff]
        %v463 = vld [vmem:[%s206 + $0xf8] sm:$0xff]
        %v464 = vld [vmem:[%s206 + $0x100] sm:$0xff]
        %v465 = vld [vmem:[%s206 + $0x108] sm:$0xff]
        %v466 = vld [vmem:[%s206 + $0x110] sm:$0xff]
        %v467 = vld [vmem:[%s206 + $0x118] sm:$0xff]
        %v468 = vld [vmem:[%s206 + $0x120] sm:$0xff]
        %v469 = vld [vmem:[%s206 + $0x128] sm:$0xff]
        %v470 = vld [vmem:[%s206 + $0x130] sm:$0xff]
        %v471 = vld [vmem:[%s206 + $0x138] sm:$0xff]
        %v472 = vld [vmem:[%s206 + $0x140] sm:$0xff]
        %v473 = vld [vmem:[%s206 + $0x148] sm:$0xff]
        %v474 = vld [vmem:[%s206 + $0x150] sm:$0xff]
        %v475 = vld [vmem:[%s206 + $0x158] sm:$0xff]
        %v476 = vld [vmem:[%s206 + $0x160] sm:$0xff]
        %v477 = vld [vmem:[%s206 + $0x168] sm:$0xff]
        %v478 = vld [vmem:[%s206 + $0x170] sm:$0xff]
        %v479 = vld [vmem:[%s206 + $0x178] sm:$0xff]
        %v480 = vld [vmem:[%s206 + $0x180] sm:$0xff]
        %v481 = vld [vmem:[%s206 + $0x188] sm:$0xff]
        %v482 = vld [vmem:[%s206 + $0x190] sm:$0xff]
        %v483 = vld [vmem:[%s206 + $0x198] sm:$0xff]
        %v484 = vld [vmem:[%s206 + $0x1a0] sm:$0xff]
        %v485 = vld [vmem:[%s206 + $0x1a8] sm:$0xff]
        %v486 = vld [vmem:[%s206 + $0x1b0] sm:$0xff]
        %v487 = vld [vmem:[%s206 + $0x1b8] sm:$0xff]
        %v488 = vld [vmem:[%s206 + $0x1c0] sm:$0xff]
        %v489 = vld [vmem:[%s206 + $0x1c8] sm:$0xff]
        %v490 = vld [vmem:[%s206 + $0x1d0] sm:$0xff]
        %v491 = vld [vmem:[%s206 + $0x1d8] sm:$0xff]
        %v492 = vld [vmem:[%s206 + $0x1e0] sm:$0xff]
        %v493 = vld [vmem:[%s206 + $0x1e8] sm:$0xff]
        %v494 = vld [vmem:[%s206 + $0x1f0] sm:$0xff]
        %v495 = vld [vmem:[%s206 + $0x1f8] sm:$0xff]
        %496 = vmatprep.subr.mxu0 0.0
        %497 = vmatpush1.msra.mxu0 %v432
        %498 = vmatprep.subr.mxu0 0.0
        %499 = vmatpush1.msra.mxu0 %v433
        %500 = vmatprep.subr.mxu0 0.0
        %501 = vmatpush1.msra.mxu0 %v434
        %502 = vmatprep.subr.mxu0 0.0
        %503 = vmatpush1.msra.mxu0 %v435
        %504 = vmatprep.subr.mxu0 0.0
        %505 = vmatpush1.msra.mxu0 %v436
        %506 = vmatprep.subr.mxu0 0.0
        %507 = vmatpush1.msra.mxu0 %v437
        %508 = vmatprep.subr.mxu0 0.0
        %509 = vmatpush1.msra.mxu0 %v438
        %510 = vmatprep.subr.mxu0 0.0
        %511 = vmatpush1.msra.mxu0 %v439
        %512 = vmatprep.subr.mxu0 0.0
        %513 = vmatpush1.msra.mxu0 %v440
        %514 = vmatprep.subr.mxu0 0.0
        %515 = vmatpush1.msra.mxu0 %v441
        %516 = vmatprep.subr.mxu0 0.0
        %517 = vmatpush1.msra.mxu0 %v442
        %518 = vmatprep.subr.mxu0 0.0
        %519 = vmatpush1.msra.mxu0 %v443
        %520 = vmatprep.subr.mxu0 0.0
        %521 = vmatpush1.msra.mxu0 %v444
        %522 = vmatprep.subr.mxu0 0.0
        %523 = vmatpush1.msra.mxu0 %v445
        %524 = vmatprep.subr.mxu0 0.0
        %525 = vmatpush1.msra.mxu0 %v446
        %526 = vmatprep.subr.mxu0 0.0
        %527 = vmatpush1.msra.mxu0 %v447
        %528 = vmatprep.subr.mxu0 0.0
        %529 = vmatpush1.msra.mxu0 %v448
        %530 = vmatprep.subr.mxu0 0.0
        %531 = vmatpush1.msra.mxu0 %v449
        %532 = vmatprep.subr.mxu0 0.0
        %533 = vmatpush1.msra.mxu0 %v450
        %534 = vmatprep.subr.mxu0 0.0
        %535 = vmatpush1.msra.mxu0 %v451
        %536 = vmatprep.subr.mxu0 0.0
        %537 = vmatpush1.msra.mxu0 %v452
        %538 = vmatprep.subr.mxu0 0.0
        %539 = vmatpush1.msra.mxu0 %v453
        %540 = vmatprep.subr.mxu0 0.0
        %541 = vmatpush1.msra.mxu0 %v454
        %542 = vmatprep.subr.mxu0 0.0
        %543 = vmatpush1.msra.mxu0 %v455
        %544 = vmatprep.subr.mxu0 0.0
        %545 = vmatpush1.msra.mxu0 %v456
        %546 = vmatprep.subr.mxu0 0.0
        %547 = vmatpush1.msra.mxu0 %v457
        %548 = vmatprep.subr.mxu0 0.0
        %549 = vmatpush1.msra.mxu0 %v458
        %550 = vmatprep.subr.mxu0 0.0
        %551 = vmatpush1.msra.mxu0 %v459
        %552 = vmatprep.subr.mxu0 0.0
        %553 = vmatpush1.msra.mxu0 %v460
        %554 = vmatprep.subr.mxu0 0.0
        %555 = vmatpush1.msra.mxu0 %v461
        %556 = vmatprep.subr.mxu0 0.0
        %557 = vmatpush1.msra.mxu0 %v462
        %558 = vmatprep.subr.mxu0 0.0
        %559 = vmatpush1.msra.mxu0 %v463
        %560 = vmatprep.mubr.f32.mxu0 %v237
        %561 = vmatmul.mubr.f32.gmra.mrb[0].mxu0 %v236
        %v562 = vpop.f32.mrb[0].mxu0
        %v563 = vadd.f32 0.0, %v562
        %v564 = vpop.f32.mrb[0].mxu0
        %565 = vmatprep.mubr.f32.mxu0 %v241
        %566 = vmatmul.mubr.f32.gmra.mrb[0].mxu0 %v240
        %v567 = vpop.f32.mrb[0].mxu0
        %v568 = vadd.f32 0.0, %v567
        %v569 = vpop.f32.mrb[0].mxu0
        %570 = vmatprep.mubr.f32.mxu0 %v245
        %571 = vmatmul.mubr.f32.gmra.mrb[0].mxu0 %v244
        %v572 = vpop.f32.mrb[0].mxu0
        %v573 = vadd.f32 0.0, %v572
        %v574 = vpop.f32.mrb[0].mxu0
        %575 = vmatprep.mubr.f32.mxu0 %v249
        %576 = vmatmul.mubr.f32.gmra.mrb[0].mxu0 %v248
        %v577 = vpop.f32.mrb[0].mxu0
        %v578 = vadd.f32 0.0, %v577
        %v579 = vpop.f32.mrb[0].mxu0
        %580 = vmatprep.mubr.f32.mxu0 %v253
        %581 = vmatmul.mubr.f32.gmra.mrb[0].mxu0 %v252
        %v582 = vpop.f32.mrb[0].mxu0
        %v583 = vadd.f32 0.0, %v582
        %v584 = vpop.f32.mrb[0].mxu0
        %585 = vmatprep.mubr.f32.mxu0 %v257
        %586 = vmatmul.mubr.f32.gmra.mrb[0].mxu0 %v256
        %v587 = vpop.f32.mrb[0].mxu0
        %v588 = vadd.f32 0.0, %v587
        %v589 = vpop.f32.mrb[0].mxu0
        %590 = vmatprep.mubr.f32.mxu0 %v261
        %591 = vmatmul.mubr.f32.gmra.mrb[0].mxu0 %v260
        %v592 = vpop.f32.mrb[0].mxu0
        %v593 = vadd.f32 0.0, %v592
        %v594 = vpop.f32.mrb[0].mxu0
        %595 = vmatprep.mubr.f32.mxu0 %v265
        %596 = vmatmul.mubr.f32.gmra.mrb[0].mxu0 %v264
        %v597 = vpop.f32.mrb[0].mxu0
        %v598 = vadd.f32 0.0, %v597
        %v599 = vpop.f32.mrb[0].mxu0
        %600 = vmatprep.mubr.f32.mxu0 %v269
        %601 = vmatmul.mubr.f32.gmra.mrb[0].mxu0 %v268
        %v602 = vpop.f32.mrb[0].mxu0
        %v603 = vadd.f32 0.0, %v602
        %v604 = vpop.f32.mrb[0].mxu0
        %605 = vmatprep.mubr.f32.mxu0 %v273
        %606 = vmatmul.mubr.f32.gmra.mrb[0].mxu0 %v272
        %v607 = vpop.f32.mrb[0].mxu0
        %v608 = vadd.f32 0.0, %v607
        %v609 = vpop.f32.mrb[0].mxu0
        %610 = vmatprep.mubr.f32.mxu0 %v277
        %611 = vmatmul.mubr.f32.gmra.mrb[0].mxu0 %v276
        %v612 = vpop.f32.mrb[0].mxu0
        %v613 = vadd.f32 0.0, %v612
        %v614 = vpop.f32.mrb[0].mxu0
        %615 = vmatprep.mubr.f32.mxu0 %v281
        %616 = vmatmul.mubr.f32.gmra.mrb[0].mxu0 %v280
        %v617 = vpop.f32.mrb[0].mxu0
        %v618 = vadd.f32 0.0, %v617
        %v619 = vpop.f32.mrb[0].mxu0
        %620 = vmatprep.mubr.f32.mxu0 %v285
        %621 = vmatmul.mubr.f32.gmra.mrb[0].mxu0 %v284
        %v622 = vpop.f32.mrb[0].mxu0
        %v623 = vadd.f32 0.0, %v622
        %v624 = vpop.f32.mrb[0].mxu0
        %625 = vmatprep.mubr.f32.mxu0 %v289
        %626 = vmatmul.mubr.f32.gmra.mrb[0].mxu0 %v288
        %v627 = vpop.f32.mrb[0].mxu0
        %v628 = vadd.f32 0.0, %v627
        %v629 = vpop.f32.mrb[0].mxu0
        %630 = vmatprep.mubr.f32.mxu0 %v293
        %631 = vmatmul.mubr.f32.gmra.mrb[0].mxu0 %v292
        %v632 = vpop.f32.mrb[0].mxu0
        %v633 = vadd.f32 0.0, %v632
        %v634 = vpop.f32.mrb[0].mxu0
        %635 = vmatprep.mubr.f32.mxu0 %v297
        %636 = vmatmul.mubr.f32.gmra.mrb[0].mxu0 %v296
        %v637 = vpop.f32.mrb[0].mxu0
        %v638 = vadd.f32 0.0, %v637
        %v639 = vpop.f32.mrb[0].mxu0
        %640 = vmatprep.mubr.f32.mxu0 %v301
        %641 = vmatmul.mubr.f32.gmra.mrb[0].mxu0 %v300
        %v642 = vpop.f32.mrb[0].mxu0
        %v643 = vadd.f32 0.0, %v642
        %v644 = vpop.f32.mrb[0].mxu0
        %645 = vmatprep.mubr.f32.mxu0 %v305
        %646 = vmatmul.mubr.f32.gmra.mrb[0].mxu0 %v304
        %v647 = vpop.f32.mrb[0].mxu0
        %v648 = vadd.f32 0.0, %v647
        %v649 = vpop.f32.mrb[0].mxu0
        %650 = vmatprep.mubr.f32.mxu0 %v309
        %651 = vmatmul.mubr.f32.gmra.mrb[0].mxu0 %v308
        %v652 = vpop.f32.mrb[0].mxu0
        %v653 = vadd.f32 0.0, %v652
        %v654 = vpop.f32.mrb[0].mxu0
        %655 = vmatprep.mubr.f32.mxu0 %v313
        %656 = vmatmul.mubr.f32.gmra.mrb[0].mxu0 %v312
        %v657 = vpop.f32.mrb[0].mxu0
        %v658 = vadd.f32 0.0, %v657
        %v659 = vpop.f32.mrb[0].mxu0
        %660 = vmatprep.mubr.f32.mxu0 %v317
        %661 = vmatmul.mubr.f32.gmra.mrb[0].mxu0 %v316
        %v662 = vpop.f32.mrb[0].mxu0
        %v663 = vadd.f32 0.0, %v662
        %v664 = vpop.f32.mrb[0].mxu0
        %665 = vmatprep.mubr.f32.mxu0 %v321
        %666 = vmatmul.mubr.f32.gmra.mrb[0].mxu0 %v320
        %v667 = vpop.f32.mrb[0].mxu0
        %v668 = vadd.f32 0.0, %v667
        %v669 = vpop.f32.mrb[0].mxu0
        %670 = vmatprep.mubr.f32.mxu0 %v325
        %671 = vmatmul.mubr.f32.gmra.mrb[0].mxu0 %v324
        %v672 = vpop.f32.mrb[0].mxu0
        %v673 = vadd.f32 0.0, %v672
        %v674 = vpop.f32.mrb[0].mxu0
        %675 = vmatprep.mubr.f32.mxu0 %v329
        %676 = vmatmul.mubr.f32.gmra.mrb[0].mxu0 %v328
        %v677 = vpop.f32.mrb[0].mxu0
        %v678 = vadd.f32 0.0, %v677
        %v679 = vpop.f32.mrb[0].mxu0
        %680 = vmatprep.mubr.f32.mxu0 %v333
        %681 = vmatmul.mubr.f32.gmra.mrb[0].mxu0 %v332
        %v682 = vpop.f32.mrb[0].mxu0
        %v683 = vadd.f32 0.0, %v682
        %v684 = vpop.f32.mrb[0].mxu0
        %685 = vmatprep.mubr.f32.mxu0 %v337
        %686 = vmatmul.mubr.f32.gmra.mrb[0].mxu0 %v336
        %v687 = vpop.f32.mrb[0].mxu0
        %v688 = vadd.f32 0.0, %v687
        %v689 = vpop.f32.mrb[0].mxu0
        %690 = vmatprep.mubr.f32.mxu0 %v341
        %691 = vmatmul.mubr.f32.gmra.mrb[0].mxu0 %v340
        %v692 = vpop.f32.mrb[0].mxu0
        %v693 = vadd.f32 0.0, %v692
        %v694 = vpop.f32.mrb[0].mxu0
        %695 = vmatprep.mubr.f32.mxu0 %v345
        %696 = vmatmul.mubr.f32.gmra.mrb[0].mxu0 %v344
        %v697 = vpop.f32.mrb[0].mxu0
        %v698 = vadd.f32 0.0, %v697
        %v699 = vpop.f32.mrb[0].mxu0
        %700 = vmatprep.mubr.f32.mxu0 %v349
        %701 = vmatmul.mubr.f32.gmra.mrb[0].mxu0 %v348
        %v702 = vpop.f32.mrb[0].mxu0
        %v703 = vadd.f32 0.0, %v702
        %v704 = vpop.f32.mrb[0].mxu0
        %705 = vmatprep.mubr.f32.mxu0 %v353
        %706 = vmatmul.mubr.f32.gmra.mrb[0].mxu0 %v352
        %v707 = vpop.f32.mrb[0].mxu0
        %v708 = vadd.f32 0.0, %v707
        %v709 = vpop.f32.mrb[0].mxu0
        %710 = vmatprep.mubr.f32.mxu0 %v357
        %711 = vmatmul.mubr.f32.gmra.mrb[0].mxu0 %v356
        %v712 = vpop.f32.mrb[0].mxu0
        %v713 = vadd.f32 0.0, %v712
        %v714 = vpop.f32.mrb[0].mxu0
        %715 = vmatprep.mubr.f32.mxu0 %v361
        %716 = vmatmul.mubr.f32.gmra.mrb[0].mxu0 %v360
        %v717 = vpop.f32.mrb[0].mxu0
        %v718 = vadd.f32 0.0, %v717
        %v719 = vpop.f32.mrb[0].mxu0
        %720 = vdwg.mxu0
        %721 = vmatprep.subr.mxu0 0.0
        %722 = vmatpush1.msra.mxu0 %v464
        %723 = vmatprep.subr.mxu0 0.0
        %724 = vmatpush1.msra.mxu0 %v465
        %725 = vmatprep.subr.mxu0 0.0
        %726 = vmatpush1.msra.mxu0 %v466
        %727 = vmatprep.subr.mxu0 0.0
        %728 = vmatpush1.msra.mxu0 %v467
        %729 = vmatprep.subr.mxu0 0.0
        %730 = vmatpush1.msra.mxu0 %v468
        %731 = vmatprep.subr.mxu0 0.0
        %732 = vmatpush1.msra.mxu0 %v469
        %733 = vmatprep.subr.mxu0 0.0
        %734 = vmatpush1.msra.mxu0 %v470
        %735 = vmatprep.subr.mxu0 0.0
        %736 = vmatpush1.msra.mxu0 %v471
        %737 = vmatprep.subr.mxu0 0.0
        %738 = vmatpush1.msra.mxu0 %v472
        %739 = vmatprep.subr.mxu0 0.0
        %740 = vmatpush1.msra.mxu0 %v473
        %741 = vmatprep.subr.mxu0 0.0
        %742 = vmatpush1.msra.mxu0 %v474
        %743 = vmatprep.subr.mxu0 0.0
        %744 = vmatpush1.msra.mxu0 %v475
        %745 = vmatprep.subr.mxu0 0.0
        %746 = vmatpush1.msra.mxu0 %v476
        %747 = vmatprep.subr.mxu0 0.0
        %748 = vmatpush1.msra.mxu0 %v477
        %749 = vmatprep.subr.mxu0 0.0
        %750 = vmatpush1.msra.mxu0 %v478
        %751 = vmatprep.subr.mxu0 0.0
        %752 = vmatpush1.msra.mxu0 %v479
        %753 = vmatprep.subr.mxu0 0.0
        %754 = vmatpush1.msra.mxu0 %v480
        %755 = vmatprep.subr.mxu0 0.0
        %756 = vmatpush1.msra.mxu0 %v481
        %757 = vmatprep.subr.mxu0 0.0
        %758 = vmatpush1.msra.mxu0 %v482
        %759 = vmatprep.subr.mxu0 0.0
        %760 = vmatpush1.msra.mxu0 %v483
        %761 = vmatprep.subr.mxu0 0.0
        %762 = vmatpush1.msra.mxu0 %v484
        %763 = vmatprep.subr.mxu0 0.0
        %764 = vmatpush1.msra.mxu0 %v485
        %765 = vmatprep.subr.mxu0 0.0
        %766 = vmatpush1.msra.mxu0 %v486
        %767 = vmatprep.subr.mxu0 0.0
        %768 = vmatpush1.msra.mxu0 %v487
        %769 = vmatprep.subr.mxu0 0.0
        %770 = vmatpush1.msra.mxu0 %v488
        %771 = vmatprep.subr.mxu0 0.0
        %772 = vmatpush1.msra.mxu0 %v489
        %773 = vmatprep.subr.mxu0 0.0
        %774 = vmatpush1.msra.mxu0 %v490
        %775 = vmatprep.subr.mxu0 0.0
        %776 = vmatpush1.msra.mxu0 %v491
        %777 = vmatprep.subr.mxu0 0.0
        %778 = vmatpush1.msra.mxu0 %v492
        %779 = vmatprep.subr.mxu0 0.0
        %780 = vmatpush1.msra.mxu0 %v493
        %781 = vmatprep.subr.mxu0 0.0
        %782 = vmatpush1.msra.mxu0 %v494
        %783 = vmatprep.subr.mxu0 0.0
        %784 = vmatpush1.msra.mxu0 %v495
        %785 = vmatprep.mubr.f32.mxu0 %v239
        %786 = vmatmul.mubr.f32.gmra.mrb[0].mxu0 %v238
        %v787 = vpop.f32.mrb[0].mxu0
        %v788 = vadd.f32 %v563, %v787
        %v789 = vpop.f32.mrb[0].mxu0
        %790 = vmatprep.mubr.f32.mxu0 %v243
        %791 = vmatmul.mubr.f32.gmra.mrb[0].mxu0 %v242
        %v792 = vpop.f32.mrb[0].mxu0
        %v793 = vadd.f32 %v568, %v792
        %v794 = vpop.f32.mrb[0].mxu0
        %795 = vmatprep.mubr.f32.mxu0 %v247
        %796 = vmatmul.mubr.f32.gmra.mrb[0].mxu0 %v246
        %v797 = vpop.f32.mrb[0].mxu0
        %v798 = vadd.f32 %v573, %v797
        %v799 = vpop.f32.mrb[0].mxu0
        %800 = vmatprep.mubr.f32.mxu0 %v251
        %801 = vmatmul.mubr.f32.gmra.mrb[0].mxu0 %v250
        %v802 = vpop.f32.mrb[0].mxu0
        %v803 = vadd.f32 %v578, %v802
        %v804 = vpop.f32.mrb[0].mxu0
        %805 = vmatprep.mubr.f32.mxu0 %v255
        %806 = vmatmul.mubr.f32.gmra.mrb[0].mxu0 %v254
        %v807 = vpop.f32.mrb[0].mxu0
        %v808 = vadd.f32 %v583, %v807
        %v809 = vpop.f32.mrb[0].mxu0
        %810 = vmatprep.mubr.f32.mxu0 %v259
        %811 = vmatmul.mubr.f32.gmra.mrb[0].mxu0 %v258
        %v812 = vpop.f32.mrb[0].mxu0
        %v813 = vadd.f32 %v588, %v812
        %v814 = vpop.f32.mrb[0].mxu0
        %815 = vmatprep.mubr.f32.mxu0 %v263
        %816 = vmatmul.mubr.f32.gmra.mrb[0].mxu0 %v262
        %v817 = vpop.f32.mrb[0].mxu0
        %v818 = vadd.f32 %v593, %v817
        %v819 = vpop.f32.mrb[0].mxu0
        %820 = vmatprep.mubr.f32.mxu0 %v267
        %821 = vmatmul.mubr.f32.gmra.mrb[0].mxu0 %v266
        %v822 = vpop.f32.mrb[0].mxu0
        %v823 = vadd.f32 %v598, %v822
        %v824 = vpop.f32.mrb[0].mxu0
        %825 = vmatprep.mubr.f32.mxu0 %v271
        %826 = vmatmul.mubr.f32.gmra.mrb[0].mxu0 %v270
        %v827 = vpop.f32.mrb[0].mxu0
        %v828 = vadd.f32 %v603, %v827
        %v829 = vpop.f32.mrb[0].mxu0
        %830 = vmatprep.mubr.f32.mxu0 %v275
        %831 = vmatmul.mubr.f32.gmra.mrb[0].mxu0 %v274
        %v832 = vpop.f32.mrb[0].mxu0
        %v833 = vadd.f32 %v608, %v832
        %v834 = vpop.f32.mrb[0].mxu0
        %835 = vmatprep.mubr.f32.mxu0 %v279
        %836 = vmatmul.mubr.f32.gmra.mrb[0].mxu0 %v278
        %v837 = vpop.f32.mrb[0].mxu0
        %v838 = vadd.f32 %v613, %v837
        %v839 = vpop.f32.mrb[0].mxu0
        %840 = vmatprep.mubr.f32.mxu0 %v283
        %841 = vmatmul.mubr.f32.gmra.mrb[0].mxu0 %v282
        %v842 = vpop.f32.mrb[0].mxu0
        %v843 = vadd.f32 %v618, %v842
        %v844 = vpop.f32.mrb[0].mxu0
        %845 = vmatprep.mubr.f32.mxu0 %v287
        %846 = vmatmul.mubr.f32.gmra.mrb[0].mxu0 %v286
        %v847 = vpop.f32.mrb[0].mxu0
        %v848 = vadd.f32 %v623, %v847
        %v849 = vpop.f32.mrb[0].mxu0
        %850 = vmatprep.mubr.f32.mxu0 %v291
        %851 = vmatmul.mubr.f32.gmra.mrb[0].mxu0 %v290
        %v852 = vpop.f32.mrb[0].mxu0
        %v853 = vadd.f32 %v628, %v852
        %v854 = vpop.f32.mrb[0].mxu0
        %855 = vmatprep.mubr.f32.mxu0 %v295
        %856 = vmatmul.mubr.f32.gmra.mrb[0].mxu0 %v294
        %v857 = vpop.f32.mrb[0].mxu0
        %v858 = vadd.f32 %v633, %v857
        %v859 = vpop.f32.mrb[0].mxu0
        %860 = vmatprep.mubr.f32.mxu0 %v299
        %861 = vmatmul.mubr.f32.gmra.mrb[0].mxu0 %v298
        %v862 = vpop.f32.mrb[0].mxu0
        %v863 = vadd.f32 %v638, %v862
        %v864 = vpop.f32.mrb[0].mxu0
        %865 = vmatprep.mubr.f32.mxu0 %v303
        %866 = vmatmul.mubr.f32.gmra.mrb[0].mxu0 %v302
        %v867 = vpop.f32.mrb[0].mxu0
        %v868 = vadd.f32 %v643, %v867
        %v869 = vpop.f32.mrb[0].mxu0
        %870 = vmatprep.mubr.f32.mxu0 %v307
        %871 = vmatmul.mubr.f32.gmra.mrb[0].mxu0 %v306
        %v872 = vpop.f32.mrb[0].mxu0
        %v873 = vadd.f32 %v648, %v872
        %v874 = vpop.f32.mrb[0].mxu0
        %875 = vmatprep.mubr.f32.mxu0 %v311
        %876 = vmatmul.mubr.f32.gmra.mrb[0].mxu0 %v310
        %v877 = vpop.f32.mrb[0].mxu0
        %v878 = vadd.f32 %v653, %v877
        %v879 = vpop.f32.mrb[0].mxu0
        %880 = vmatprep.mubr.f32.mxu0 %v315
        %881 = vmatmul.mubr.f32.gmra.mrb[0].mxu0 %v314
        %v882 = vpop.f32.mrb[0].mxu0
        %v883 = vadd.f32 %v658, %v882
        %v884 = vpop.f32.mrb[0].mxu0
        %885 = vmatprep.mubr.f32.mxu0 %v319
        %886 = vmatmul.mubr.f32.gmra.mrb[0].mxu0 %v318
        %v887 = vpop.f32.mrb[0].mxu0
        %v888 = vadd.f32 %v663, %v887
        %v889 = vpop.f32.mrb[0].mxu0
        %890 = vmatprep.mubr.f32.mxu0 %v323
        %891 = vmatmul.mubr.f32.gmra.mrb[0].mxu0 %v322
        %v892 = vpop.f32.mrb[0].mxu0
        %v893 = vadd.f32 %v668, %v892
        %v894 = vpop.f32.mrb[0].mxu0
        %895 = vmatprep.mubr.f32.mxu0 %v327
        %896 = vmatmul.mubr.f32.gmra.mrb[0].mxu0 %v326
        %v897 = vpop.f32.mrb[0].mxu0
        %v898 = vadd.f32 %v673, %v897
        %v899 = vpop.f32.mrb[0].mxu0
        %900 = vmatprep.mubr.f32.mxu0 %v331
        %901 = vmatmul.mubr.f32.gmra.mrb[0].mxu0 %v330
        %v902 = vpop.f32.mrb[0].mxu0
        %v903 = vadd.f32 %v678, %v902
        %v904 = vpop.f32.mrb[0].mxu0
        %905 = vmatprep.mubr.f32.mxu0 %v335
        %906 = vmatmul.mubr.f32.gmra.mrb[0].mxu0 %v334
        %v907 = vpop.f32.mrb[0].mxu0
        %v908 = vadd.f32 %v683, %v907
        %v909 = vpop.f32.mrb[0].mxu0
        %910 = vmatprep.mubr.f32.mxu0 %v339
        %911 = vmatmul.mubr.f32.gmra.mrb[0].mxu0 %v338
        %v912 = vpop.f32.mrb[0].mxu0
        %v913 = vadd.f32 %v688, %v912
        %v914 = vpop.f32.mrb[0].mxu0
        %915 = vmatprep.mubr.f32.mxu0 %v343
        %916 = vmatmul.mubr.f32.gmra.mrb[0].mxu0 %v342
        %v917 = vpop.f32.mrb[0].mxu0
        %v918 = vadd.f32 %v693, %v917
        %v919 = vpop.f32.mrb[0].mxu0
        %920 = vmatprep.mubr.f32.mxu0 %v347
        %921 = vmatmul.mubr.f32.gmra.mrb[0].mxu0 %v346
        %v922 = vpop.f32.mrb[0].mxu0
        %v923 = vadd.f32 %v698, %v922
        %v924 = vpop.f32.mrb[0].mxu0
        %925 = vmatprep.mubr.f32.mxu0 %v351
        %926 = vmatmul.mubr.f32.gmra.mrb[0].mxu0 %v350
        %v927 = vpop.f32.mrb[0].mxu0
        %v928 = vadd.f32 %v703, %v927
        %v929 = vpop.f32.mrb[0].mxu0
        %930 = vmatprep.mubr.f32.mxu0 %v355
        %931 = vmatmul.mubr.f32.gmra.mrb[0].mxu0 %v354
        %v932 = vpop.f32.mrb[0].mxu0
        %v933 = vadd.f32 %v708, %v932
        %v934 = vpop.f32.mrb[0].mxu0
        %935 = vmatprep.mubr.f32.mxu0 %v359
        %936 = vmatmul.mubr.f32.gmra.mrb[0].mxu0 %v358
        %v937 = vpop.f32.mrb[0].mxu0
        %v938 = vadd.f32 %v713, %v937
        %v939 = vpop.f32.mrb[0].mxu0
        %940 = vmatprep.mubr.f32.mxu0 %v363
        %941 = vmatmul.mubr.f32.gmra.mrb[0].mxu0 %v362
        %v942 = vpop.f32.mrb[0].mxu0
        %v943 = vadd.f32 %v718, %v942
        %v944 = vpop.f32.mrb[0].mxu0
        %945 = vdwg.mxu0
        %v946 = vadd.f32 %v400, %v788
        %v947 = vadd.f32 %v401, %v793
        %v948 = vadd.f32 %v402, %v798
        %v949 = vadd.f32 %v403, %v803
        %v950 = vadd.f32 %v404, %v808
        %v951 = vadd.f32 %v405, %v813
        %v952 = vadd.f32 %v406, %v818
        %v953 = vadd.f32 %v407, %v823
        %v954 = vadd.f32 %v408, %v828
        %v955 = vadd.f32 %v409, %v833
        %v956 = vadd.f32 %v410, %v838
        %v957 = vadd.f32 %v411, %v843
        %v958 = vadd.f32 %v412, %v848
        %v959 = vadd.f32 %v413, %v853
        %v960 = vadd.f32 %v414, %v858
        %v961 = vadd.f32 %v415, %v863
        %v962 = vadd.f32 %v416, %v868
        %v963 = vadd.f32 %v417, %v873
        %v964 = vadd.f32 %v418, %v878
        %v965 = vadd.f32 %v419, %v883
        %v966 = vadd.f32 %v420, %v888
        %v967 = vadd.f32 %v421, %v893
        %v968 = vadd.f32 %v422, %v898
        %v969 = vadd.f32 %v423, %v903
        %v970 = vadd.f32 %v424, %v908
        %v971 = vadd.f32 %v425, %v913
        %v972 = vadd.f32 %v426, %v918
        %v973 = vadd.f32 %v427, %v923
        %v974 = vadd.f32 %v428, %v928
        %v975 = vadd.f32 %v429, %v933
        %v976 = vadd.f32 %v430, %v938
        %v977 = vadd.f32 %v431, %v943
        %978 = vst [vmem:[%s231] sm:$0xff] %v946
        %979 = vst [vmem:[%s231 + $0x8] sm:$0xff] %v947
        %980 = vst [vmem:[%s231 + $0x10] sm:$0xff] %v948
        %981 = vst [vmem:[%s231 + $0x18] sm:$0xff] %v949
        %982 = vst [vmem:[%s231 + $0x20] sm:$0xff] %v950
        %983 = vst [vmem:[%s231 + $0x28] sm:$0xff] %v951
        %984 = vst [vmem:[%s231 + $0x30] sm:$0xff] %v952
        %985 = vst [vmem:[%s231 + $0x38] sm:$0xff] %v953
        %986 = vst [vmem:[%s231 + $0x40] sm:$0xff] %v954
        %987 = vst [vmem:[%s231 + $0x48] sm:$0xff] %v955
        %988 = vst [vmem:[%s231 + $0x50] sm:$0xff] %v956
        %989 = vst [vmem:[%s231 + $0x58] sm:$0xff] %v957
        %990 = vst [vmem:[%s231 + $0x60] sm:$0xff] %v958
        %991 = vst [vmem:[%s231 + $0x68] sm:$0xff] %v959
        %992 = vst [vmem:[%s231 + $0x70] sm:$0xff] %v960
        %993 = vst [vmem:[%s231 + $0x78] sm:$0xff] %v961
        %994 = vst [vmem:[%s231 + $0x80] sm:$0xff] %v962
        %995 = vst [vmem:[%s231 + $0x88] sm:$0xff] %v963
        %996 = vst [vmem:[%s231 + $0x90] sm:$0xff] %v964
        %997 = vst [vmem:[%s231 + $0x98] sm:$0xff] %v965
        %998 = vst [vmem:[%s231 + $0xa0] sm:$0xff] %v966
        %999 = vst [vmem:[%s231 + $0xa8] sm:$0xff] %v967
        %1000 = vst [vmem:[%s231 + $0xb0] sm:$0xff] %v968
        %1001 = vst [vmem:[%s231 + $0xb8] sm:$0xff] %v969
        %1002 = vst [vmem:[%s231 + $0xc0] sm:$0xff] %v970
        %1003 = vst [vmem:[%s231 + $0xc8] sm:$0xff] %v971
        %1004 = vst [vmem:[%s231 + $0xd0] sm:$0xff] %v972
        %1005 = vst [vmem:[%s231 + $0xd8] sm:$0xff] %v973
        %1006 = vst [vmem:[%s231 + $0xe0] sm:$0xff] %v974
        %1007 = vst [vmem:[%s231 + $0xe8] sm:$0xff] %v975
        %1008 = vst [vmem:[%s231 + $0xf0] sm:$0xff] %v976
        %1009 = vst [vmem:[%s231 + $0xf8] sm:$0xff] %v977
        %s1010 = sand.u32 %s107, 1
        %s1011 = scalar_lea.sflag [#allocation4], %s1010
        %s1012 = sand.u32 %s107, 1
        %s1013 = smul.addr %s1012, 256
        %s1014 = scalar_lea.vmem [#allocation7], %s1013
        // Predicated region
        $region41: #{tpu_custom_call.1} parent=27 // pred_check
          %p1015 = pneg %p117
        $region42: #{tpu_custom_call.1} parent=27 // pred_check_branch
          %1017 = sbr.rel (%p1015) target = $region44
        $region43: #{tpu_custom_call.1} parent=27 // pred_region
          %s1018 = smul.u32 32, %s27
          %s1020 = ssub.s32 4096, 4096
          %1021 = vsyncadd %s1011, %s1020
          %s1022 = smul.addr %s1018, 3
          %s1023 = sadd.s32 %s28, %s1022
          %s1024 = smul.addr %s1023, 128
          %s1025 = scalar_lea.hbm %s2, %s1024
          %s1026 = sshll.u32 %s1014, 4
          %s1027 = int_to_ptr.vmem [resolvable:$true] %s1026
          %1032 = dma.vmem_to_hbm [thread:$0]  %s1027, 4096, %s1025, %s1011, 128, 384, 8
        $region44: #{tpu_custom_call.1} parent=27 // pred_fallthru
          _
      $region28: #{tpu_custom_call.1} parent=5 // pred_fallthru
        _
      %p1033 = scmp.le.s32.totalorder 2, %s17
      // Predicated region
      $region45: #{tpu_custom_call.1} parent=5 // pred_check
        %p1034 = pneg %p1033
      $region46: #{tpu_custom_call.1} parent=5 // pred_check_branch
        %1036 = sbr.rel (%p1034) target = $region48
      $region47: #{tpu_custom_call.1} parent=5 // pred_region
        %s1037 = ssub.s32 %s17, 2
        // Predicated region
        $region49: #{tpu_custom_call.1} parent=47 // pred_check
          %p1038 = pneg %p123
        $region50: #{tpu_custom_call.1} parent=47 // pred_check_branch
          %1040 = sbr.rel (%p1038) target = $region52
        $region51: #{tpu_custom_call.1} parent=47 // pred_region
          %s1041 = sand.u32 %s108, 1
          %s1042 = scalar_lea.sflag [#allocation4], %s1041
          %s1043 = sand.u32 %s108, 1
          %s1044 = smul.addr %s1043, 256
          %s1045 = scalar_lea.vmem [#allocation7], %s1044
          %1046 = dma.done %s1042, 4096
        $region52: #{tpu_custom_call.1} parent=47 // pred_fallthru
          _
      $region48: #{tpu_custom_call.1} parent=5 // pred_fallthru
        _
    $region6: #{tpu_custom_call.1} parent=1 // loop_footer
      %s21 = sadd.s32 1, %s17
    $region7: #{tpu_custom_call.1} parent=1 // loop_footer_branch
      %16 = sbr.rel target = $region3
    $region8: #{tpu_custom_call.1} parent=1 // loop_exit
      _
    %1047 = vsyncpa [#allocation3], 1
    %s1048 = scalar_lea.sflag [#allocation3], 1
    %1049 = vsyncpa %s1048, 1
    %1050 = vsyncpa [#allocation6], 1
    %s1051 = scalar_lea.sflag [#allocation6], 1
    %1052 = vsyncpa %s1051, 1
    %1053 = vsyncpa [#allocation4], 1
    %s1054 = scalar_lea.sflag [#allocation4], 1
    %1055 = vsyncpa %s1054, 1

</llo_original>
